<compile_context>
chip_gen: v7x
topology: tpu7x:2x2x1
jax: 0.10.0
libtpu: 0.0.40
codegen_flags: <defaults>
</compile_context>

<pallas_src>
import functools
import math

import jax
import jax.numpy as jnp
from jax.experimental import pallas as pl
from jax.experimental.pallas import tpu as pltpu


def _round_up(x, n):
    return ((x + n - 1) // n) * n


def _pick_tile(dim, t_default, align):
    """Largest `align`-multiple tile <= t_default whose padding waste on `dim`
    stays below ~12.5% (fixes e.g. B=300 -> tile 256 -> padded 512)."""
    if dim <= t_default:
        return dim                       # one block covering the whole (padded) dim
    t = max(align, (t_default // align) * align)
    while t > align and (_round_up(dim, t) - dim) * 8 > dim:
        t -= align
    return t


def _tpu_tile_defaults():
    """Per-generation tile / scoped-VMEM defaults.

    v7x: 64 MiB VMEM/TC and ridge ~310 flop/B -> ~1024 tiles already reach
    compute-bound; keep tk moderate so double-buffered (m,tk,tn) weights fit.
    v5e/v6e: 128 MiB VMEM -> larger K tiles amortize the ~0.35 us grid-step
    overhead; raise the scoped-VMEM limit accordingly.
    """
    vmem = 128 << 20
    try:
        info = pltpu.get_tpu_info()
        vmem = int(getattr(info, "vmem_capacity_bytes", vmem) or vmem)
    except Exception:
        pass
    if vmem <= (96 << 20):                        # v7x-class (64 MiB / TensorCore)
        return dict(tm=1024, tn=1024, tk=512, vmem_limit=48 << 20)
    return dict(tm=1024, tn=1024, tk=1024, vmem_limit=96 << 20)   # v5e / v6e


def _linear_ien_kernel(minv_ref, x_ref, w_ref, b_ref, o_ref, acc_ref):
    """One (tm, tn) output tile of sum_i minv[i] * (x @ W_i + b_i).

    Grid = (B blocks, N blocks, K blocks); axis 2 is the reduction.  The m-way
    ensemble fold runs on the VPU (f32 accumulation) on the streamed bf16
    weight tile, so the folded W_eff never exists in HBM.
    """
    m = w_ref.shape[0]

    @pl.when(pl.program_id(2) == 0)
    def _():
        acc_ref[...] = jnp.zeros_like(acc_ref)

    # VPU fold: W_eff tile = sum_i minv[i] * W_i tile  (f32 accumulation).
    w_f = minv_ref[0] * w_ref[0].astype(jnp.float32)
    for i in range(1, m):
        w_f = w_f + minv_ref[i] * w_ref[i].astype(jnp.float32)

    # MXU matmul in the compute dtype (bf16 fast path), f32 accumulator.
    acc_ref[...] += jnp.dot(
        x_ref[...], w_f.astype(x_ref.dtype), preferred_element_type=jnp.float32
    )

    @pl.when(pl.program_id(2) == pl.num_programs(2) - 1)
    def _():
        b_blk = b_ref[...].astype(jnp.float32)              # (m, tn)
        b_f = minv_ref[0] * b_blk[0:1, :]
        for i in range(1, m):
            b_f = b_f + minv_ref[i] * b_blk[i:i + 1, :]
        o_ref[...] = (acc_ref[...] + b_f).astype(o_ref.dtype)


def _fused_linear_ien(x, weights_t, biases, minv, *, tm, tn, tk, vmem_limit,
                      out_dtype):
    """out = sum_i minv[i] * (x @ weights_t[i] + biases[i]).

    x:(B,K) compute dtype; weights_t:(m,K,N) compute dtype; biases:(m,N) f32;
    minv:(m,) f32 (lives whole in SMEM)."""
    B, K = x.shape
    m, K2, N = weights_t.shape
    assert K == K2 and biases.shape == (m, N) and minv.shape == (m,)

    sub = 16 if x.dtype == jnp.bfloat16 else 8
    Bp0, Kp0, Np0 = _round_up(B, sub), _round_up(K, 128), _round_up(N, 128)

    tm = _pick_tile(Bp0, tm, sub)
    tk = _pick_tile(Kp0, tk, 128)
    tn = _pick_tile(Np0, tn, 128)

    # Guarantee >=2 blocks along a parallel axis so both v7x TensorCores get
    # work (megacore can't shard a size-1 axis).  Costs one extra ~0.35 us grid
    # step on single-core chips, up to 2x faster on v7x.
    if Bp0 <= tm and Np0 <= tn and Np0 >= 256:
        tn = max(128, (Np0 // 2 // 128) * 128)

    Bp, Kp, Np = _round_up(Bp0, tm), _round_up(Kp0, tk), _round_up(Np0, tn)

    # Pad only when needed: skip full-array HBM copies on aligned shapes.
    x_p = x if (Bp == B and Kp == K) else jnp.pad(x, ((0, Bp - B), (0, Kp - K)))
    w_p = (weights_t if (Kp == K and Np == N)
           else jnp.pad(weights_t, ((0, 0), (0, Kp - K), (0, Np - N))))
    b_p = biases if Np == N else jnp.pad(biases, ((0, 0), (0, Np - N)))

    grid = (Bp // tm, Np // tn, Kp // tk)

    out = pl.pallas_call(
        _linear_ien_kernel,
        out_shape=jax.ShapeDtypeStruct((Bp, Np), out_dtype),
        grid_spec=pltpu.PrefetchScalarGridSpec(
            num_scalar_prefetch=0,
            grid=grid,
            in_specs=[
                pl.BlockSpec(memory_space=pltpu.MemorySpace.SMEM),     # minv
                pl.BlockSpec((tm, tk), lambda i, j, k: (i, k)),        # x tile
                pl.BlockSpec((m, tk, tn), lambda i, j, k: (0, k, j)),  # W_i tiles
                pl.BlockSpec((m, tn), lambda i, j, k: (0, j)),         # b_i tiles
            ],
            out_specs=pl.BlockSpec((tm, tn), lambda i, j, k: (i, j)),
            scratch_shapes=[pltpu.VMEM((tm, tn), jnp.float32)],
        ),
        compiler_params=pltpu.CompilerParams(
            # B and N axes independent -> megacore-shardable; K is the
            # accumulator reduction axis.
            dimension_semantics=("parallel", "parallel", "arbitrary"),
            vmem_limit_bytes=vmem_limit,
        ),
        cost_estimate=pl.CostEstimate(
            flops=2 * Bp * Kp * Np + 2 * m * Kp * Np * (Bp // tm),
            transcendentals=0,
            bytes_accessed=(
                x_p.size * x_p.dtype.itemsize * (Np // tn)
                + w_p.size * w_p.dtype.itemsize * (Bp // tm)
                + b_p.size * b_p.dtype.itemsize
                + Bp * Np * jnp.dtype(out_dtype).itemsize
            ),
        ),
    )(minv, x_p, w_p, b_p)

    return out if (Bp == B and Np == N) else out[:B, :N]


@functools.partial(
    jax.jit, static_argnames=("compute_dtype", "out_dtype", "tm", "tn", "tk"))
def linear_ien_forward(x, weights_t, biases, minv, *,
                       compute_dtype=jnp.bfloat16, out_dtype=jnp.bfloat16,
                       tm=None, tn=None, tk=None):
    """Linear_ien forward (domms=True).

    x:(B,K); weights_t:(m,K,N) (store bf16 at rest); biases:(m,N); minv:(m,)."""
    B, K = x.shape
    m, K2, N = weights_t.shape
    assert K == K2 and biases.shape == (m, N) and minv.shape == (m,)

    defaults = _tpu_tile_defaults()
    tm = defaults["tm"] if tm is None else tm
    tn = defaults["tn"] if tn is None else tn
    tk = defaults["tk"] if tk is None else tk

    return _fused_linear_ien(
        x.astype(compute_dtype),
        weights_t.astype(compute_dtype),
        biases.astype(jnp.float32),
        minv.astype(jnp.float32),
        tm=tm, tn=tn, tk=tk, vmem_limit=defaults["vmem_limit"],
        out_dtype=out_dtype,
    )


def make_params(key, in_features, out_features, m=4):
    """Deterministic f32 master params matching Linear_ien.__init__ statistics."""
    kw, kb = jax.random.split(key)
    # ien_normal_: fan_in = in_features, gain = sqrt(2) (relu) * sqrt(m)
    std = math.sqrt(2.0) * math.sqrt(m) / math.sqrt(in_features)
    # PyTorch nn.Linear weight is (out, in); store transposed as (m, in, out).
    weights_t = std * jax.random.normal(
        kw, (m, in_features, out_features), dtype=jnp.float32)
    bound = 1.0 / math.sqrt(in_features)
    biases = jax.random.uniform(
        kb, (m, out_features), minval=-bound, maxval=bound, dtype=jnp.float32)
    minv = jnp.full((m,), 1.0 / m, dtype=jnp.float32)
    return weights_t, biases, minv


if __name__ == "__main__":
    # TODO(synk): the domms=False branch (self.sublin) is just a single plain
    # linear; it would reuse this kernel with m=1 and is not exercised here.
    B, IN, OUT, M = 16, 256, 384, 4
    key = jax.random.PRNGKey(0)
    kx, kp = jax.random.split(key)
    x = jax.random.normal(kx, (B, IN), dtype=jnp.float32)
    weights_f32, biases, minv = make_params(kp, IN, OUT, m=M)

    # Weights live in bf16 at rest (halves weight HBM reads; MXU-native dtype).
    weights_bf16 = weights_f32.astype(jnp.bfloat16)
    x_bf16 = x.astype(jnp.bfloat16)

    out = linear_ien_forward(x_bf16, weights_bf16, biases, minv)
    out = jax.block_until_ready(out)
    out_f32 = out.astype(jnp.float32)

    # Reference 1: original per-member f32 ensemble (loose; tolerance covers
    # bf16 operand/output rounding in the kernel).
    ref = jnp.zeros((B, OUT), jnp.float32)
    for i in range(M):
        ref = ref + minv[i] * (
            jnp.dot(x, weights_f32[i], precision=jax.lax.Precision.HIGHEST)
            + biases[i][None, :]
        )
    assert jnp.allclose(out_f32, ref, atol=6e-2, rtol=6e-2), \
        "mismatch vs f32 ensemble reference"

    # Reference 2: bf16-rounded member weights, f32 fold, bf16-rounded W_eff
    # and x, f32 matmul + f32 bias -- matches the kernel arithmetic up to bf16
    # output rounding (tight check of the tiling / accumulation).
    w_mem = weights_bf16.astype(jnp.float32)
    w_eff = ((minv[:, None, None] * w_mem).sum(axis=0)
             .astype(jnp.bfloat16).astype(jnp.float32))
    b_eff = (minv[:, None] * biases).sum(axis=0)
    x_r = x_bf16.astype(jnp.float32)
    ref2 = jnp.dot(x_r, w_eff, precision=jax.lax.Precision.HIGHEST) + b_eff[None, :]
    assert jnp.allclose(out_f32, ref2, atol=2e-2, rtol=2e-2), \
        "mismatch vs folded bf16 reference"

    print("KERNEL_OK")
</pallas_src>

<mosaic_0001>
module attributes {stable_mosaic.version = 11 : i64} {
  func.func @_linear_ien_kernel(%arg0: i32, %arg1: i32, %arg2: i32, %arg3: memref<4xf32, #tpu.memory_space<smem>>, %arg4: memref<16x256xbf16, #tpu.memory_space<vmem>>, %arg5: memref<4x256x128xbf16, #tpu.memory_space<vmem>>, %arg6: memref<4x128xf32, #tpu.memory_space<vmem>>, %arg7: memref<16x128xbf16, #tpu.memory_space<vmem>>, %arg8: memref<16x128xf32, #tpu.memory_space<vmem>>) attributes {dimension_semantics = [#tpu.dimension_semantics<parallel>, #tpu.dimension_semantics<parallel>, #tpu.dimension_semantics<arbitrary>], iteration_bounds = array<i64: 1, 3, 1>, scalar_prefetch = 0 : i64, scratch_operands = 1 : i64, tpu.core_type = #tpu.core_type<tc>, window_params = [{transform_indices = @transform_0, window_bounds = array<i64: 4>}, {transform_indices = @transform_1, window_bounds = array<i64: 16, 256>}, {transform_indices = @transform_2, window_bounds = array<i64: 4, 256, 128>}, {transform_indices = @transform_3, window_bounds = array<i64: 4, 128>}, {transform_indices = @transform_4, window_bounds = array<i64: 16, 128>}]} {
    %c0_i32 = arith.constant 0 : i32
    %0 = arith.cmpi eq, %arg2, %c0_i32 : i32
    %1 = arith.extui %0 : i1 to i32
    %c0_i32_0 = arith.constant 0 : i32
    %2 = arith.cmpi ne, %1, %c0_i32_0 : i32
    scf.if %2 {
      %cst_21 = arith.constant 0.000000e+00 : f32
      %39 = vector.broadcast %cst_21 : f32 to vector<16x128xf32>
      %c0_22 = arith.constant 0 : index
      %c0_23 = arith.constant 0 : index
      %40 = vector.load %arg8[%c0_22, %c0_23] : memref<16x128xf32, #tpu.memory_space<vmem>>, vector<16x128xf32>
      tpu.vector_store %arg8[%c0_22, %c0_23], %39 {strides = array<i32>} : memref<16x128xf32, #tpu.memory_space<vmem>>, vector<16x128xf32>,
    } else {
    }
    %c0 = arith.constant 0 : index
    %3 = memref.load %arg3[%c0] : memref<4xf32, #tpu.memory_space<smem>>
    %c0_1 = arith.constant 0 : index
    %c0_2 = arith.constant 0 : index
    %c0_3 = arith.constant 0 : index
    %4 = vector.load %arg5[%c0_1, %c0_2, %c0_3] : memref<4x256x128xbf16, #tpu.memory_space<vmem>>, vector<1x256x128xbf16>
    %5 = vector.shape_cast %4 : vector<1x256x128xbf16> to vector<256x128xbf16>
    %6 = arith.extf %5 : vector<256x128xbf16> to vector<256x128xf32>
    %7 = vector.broadcast %3 : f32 to vector<256x128xf32>
    %8 = arith.mulf %7, %6 : vector<256x128xf32>
    %c1 = arith.constant 1 : index
    %9 = memref.load %arg3[%c1] : memref<4xf32, #tpu.memory_space<smem>>
    %c1_4 = arith.constant 1 : index
    %c0_5 = arith.constant 0 : index
    %c0_6 = arith.constant 0 : index
    %10 = vector.load %arg5[%c1_4, %c0_5, %c0_6] : memref<4x256x128xbf16, #tpu.memory_space<vmem>>, vector<1x256x128xbf16>
    %11 = vector.shape_cast %10 : vector<1x256x128xbf16> to vector<256x128xbf16>
    %12 = arith.extf %11 : vector<256x128xbf16> to vector<256x128xf32>
    %13 = vector.broadcast %9 : f32 to vector<256x128xf32>
    %14 = arith.mulf %13, %12 : vector<256x128xf32>
    %15 = arith.addf %8, %14 : vector<256x128xf32>
    %c2 = arith.constant 2 : index
    %16 = memref.load %arg3[%c2] : memref<4xf32, #tpu.memory_space<smem>>
    %c2_7 = arith.constant 2 : index
    %c0_8 = arith.constant 0 : index
    %c0_9 = arith.constant 0 : index
    %17 = vector.load %arg5[%c2_7, %c0_8, %c0_9] : memref<4x256x128xbf16, #tpu.memory_space<vmem>>, vector<1x256x128xbf16>
    %18 = vector.shape_cast %17 : vector<1x256x128xbf16> to vector<256x128xbf16>
    %19 = arith.extf %18 : vector<256x128xbf16> to vector<256x128xf32>
    %20 = vector.broadcast %16 : f32 to vector<256x128xf32>
    %21 = arith.mulf %20, %19 : vector<256x128xf32>
    %22 = arith.addf %15, %21 : vector<256x128xf32>
    %c3 = arith.constant 3 : index
    %23 = memref.load %arg3[%c3] : memref<4xf32, #tpu.memory_space<smem>>
    %c3_10 = arith.constant 3 : index
    %c0_11 = arith.constant 0 : index
    %c0_12 = arith.constant 0 : index
    %24 = vector.load %arg5[%c3_10, %c0_11, %c0_12] : memref<4x256x128xbf16, #tpu.memory_space<vmem>>, vector<1x256x128xbf16>
    %25 = vector.shape_cast %24 : vector<1x256x128xbf16> to vector<256x128xbf16>
    %26 = arith.extf %25 : vector<256x128xbf16> to vector<256x128xf32>
    %27 = vector.broadcast %23 : f32 to vector<256x128xf32>
    %28 = arith.mulf %27, %26 : vector<256x128xf32>
    %29 = arith.addf %22, %28 : vector<256x128xf32>
    %c0_13 = arith.constant 0 : index
    %c0_14 = arith.constant 0 : index
    %30 = vector.load %arg8[%c0_13, %c0_14] : memref<16x128xf32, #tpu.memory_space<vmem>>, vector<16x128xf32>
    %c0_15 = arith.constant 0 : index
    %c0_16 = arith.constant 0 : index
    %31 = vector.load %arg4[%c0_15, %c0_16] : memref<16x256xbf16, #tpu.memory_space<vmem>>, vector<16x256xbf16>
    %32 = arith.truncf %29 : vector<256x128xf32> to vector<256x128xbf16>
    %cst = arith.constant dense<0.000000e+00> : vector<16x128xf32>
    %33 = tpu.matmul %31, %32, %cst {dimension_numbers = #tpu.dot_dimension_numbers<[1], [0], [0], [1], [0, 0, 1, 1], [], []>} : vector<16x256xbf16>, vector<256x128xbf16>, vector<16x128xf32> -> vector<16x128xf32>
    %34 = arith.addf %30, %33 : vector<16x128xf32>
    %c0_17 = arith.constant 0 : index
    %c0_18 = arith.constant 0 : index
    %35 = vector.load %arg8[%c0_17, %c0_18] : memref<16x128xf32, #tpu.memory_space<vmem>>, vector<16x128xf32>
    tpu.vector_store %arg8[%c0_17, %c0_18], %34 {strides = array<i32>} : memref<16x128xf32, #tpu.memory_space<vmem>>, vector<16x128xf32>,
    %c0_i32_19 = arith.constant 0 : i32
    %36 = arith.cmpi eq, %arg2, %c0_i32_19 : i32
    %37 = arith.extui %36 : i1 to i32
    %c0_i32_20 = arith.constant 0 : i32
    %38 = arith.cmpi ne, %37, %c0_i32_20 : i32
    scf.if %38 {
      %c0_21 = arith.constant 0 : index
      %c0_22 = arith.constant 0 : index
      %39 = vector.load %arg6[%c0_21, %c0_22] : memref<4x128xf32, #tpu.memory_space<vmem>>, vector<4x128xf32>
      %c0_23 = arith.constant 0 : index
      %40 = memref.load %arg3[%c0_23] : memref<4xf32, #tpu.memory_space<smem>>
      %41 = vector.extract_strided_slice %39 {offsets = [0, 0], sizes = [1, 128], strides = [1, 1]} : vector<4x128xf32> to vector<1x128xf32>
      %42 = vector.broadcast %40 : f32 to vector<1x128xf32>
      %43 = arith.mulf %42, %41 : vector<1x128xf32>
      %c1_24 = arith.constant 1 : index
      %44 = memref.load %arg3[%c1_24] : memref<4xf32, #tpu.memory_space<smem>>
      %45 = vector.extract_strided_slice %39 {offsets = [1, 0], sizes = [1, 128], strides = [1, 1]} : vector<4x128xf32> to vector<1x128xf32>
      %46 = vector.broadcast %44 : f32 to vector<1x128xf32>
      %47 = arith.mulf %46, %45 : vector<1x128xf32>
      %48 = arith.addf %43, %47 : vector<1x128xf32>
      %c2_25 = arith.constant 2 : index
      %49 = memref.load %arg3[%c2_25] : memref<4xf32, #tpu.memory_space<smem>>
      %50 = vector.extract_strided_slice %39 {offsets = [2, 0], sizes = [1, 128], strides = [1, 1]} : vector<4x128xf32> to vector<1x128xf32>
      %51 = vector.broadcast %49 : f32 to vector<1x128xf32>
      %52 = arith.mulf %51, %50 : vector<1x128xf32>
      %53 = arith.addf %48, %52 : vector<1x128xf32>
      %c3_26 = arith.constant 3 : index
      %54 = memref.load %arg3[%c3_26] : memref<4xf32, #tpu.memory_space<smem>>
      %55 = vector.extract_strided_slice %39 {offsets = [3, 0], sizes = [1, 128], strides = [1, 1]} : vector<4x128xf32> to vector<1x128xf32>
      %56 = vector.broadcast %54 : f32 to vector<1x128xf32>
      %57 = arith.mulf %56, %55 : vector<1x128xf32>
      %58 = arith.addf %53, %57 : vector<1x128xf32>
      %c0_27 = arith.constant 0 : index
      %c0_28 = arith.constant 0 : index
      %59 = vector.load %arg8[%c0_27, %c0_28] : memref<16x128xf32, #tpu.memory_space<vmem>>, vector<16x128xf32>
      %60 = vector.broadcast %58 : vector<1x128xf32> to vector<16x128xf32>
      %61 = arith.addf %59, %60 : vector<16x128xf32>
      %62 = arith.truncf %61 : vector<16x128xf32> to vector<16x128xbf16>
      %c0_29 = arith.constant 0 : index
      %c0_30 = arith.constant 0 : index
      %63 = vector.load %arg7[%c0_29, %c0_30] : memref<16x128xbf16, #tpu.memory_space<vmem>>, vector<16x128xbf16>
      tpu.vector_store %arg7[%c0_29, %c0_30], %62 {strides = array<i32>} : memref<16x128xbf16, #tpu.memory_space<vmem>>, vector<16x128xbf16>,
    } else {
    }
    return
  }
  func.func @transform_0(%arg0: i32, %arg1: i32, %arg2: i32) -> i32 {
    %c0_i32 = arith.constant 0 : i32
    %c0_i32_0 = arith.constant 0 : i32
    return %c0_i32 : i32
  }
  func.func @transform_1(%arg0: i32, %arg1: i32, %arg2: i32) -> (i32, i32) {
    %c0_i32 = arith.constant 0 : i32
    return %arg0, %arg2 : i32, i32
  }
  func.func @transform_2(%arg0: i32, %arg1: i32, %arg2: i32) -> (i32, i32, i32) {
    %c0_i32 = arith.constant 0 : i32
    %c0_i32_0 = arith.constant 0 : i32
    return %c0_i32, %arg2, %arg1 : i32, i32, i32
  }
  func.func @transform_3(%arg0: i32, %arg1: i32, %arg2: i32) -> (i32, i32) {
    %c0_i32 = arith.constant 0 : i32
    %c0_i32_0 = arith.constant 0 : i32
    return %c0_i32, %arg1 : i32, i32
  }
  func.func @transform_4(%arg0: i32, %arg1: i32, %arg2: i32) -> (i32, i32) {
    %c0_i32 = arith.constant 0 : i32
    return %arg0, %arg1 : i32, i32
  }
}

</mosaic_0001>

<llo_original>
// kernel: linear_ien_forward.1
$region0: #{linear_ien_forward.1}
  #allocation0 [shape = 'u32[]', space=smem, size = 0x4, offset = 0x4, fixed_abs, tag = 'smem constant byte address 0x4 - core index']
  #allocation1 [shape = 'u32[144,128]{1,0:T(1,128)}', space=vmem, size = 0x12000, scoped, tag = 'internal scratch']
  #allocation2 [shape = 'f32[16,128]{1,0:T(8,128)}', space=vmem, size = 0x2000, scoped, tag = 'scratch operand']
  %s0 = inlined_call_operand.hbm [shape: f32[4], index: 0, kind: input, shape index: {}]
  %s1 = inlined_call_operand.hbm [shape: bf16[16,256], index: 1, kind: input, shape index: {}]
  %s2 = inlined_call_operand.hbm [shape: bf16[4,256,384], index: 2, kind: input, shape index: {}]
  %s3 = inlined_call_operand.hbm [shape: f32[4,384], index: 3, kind: input, shape index: {}]
  %s4 = inlined_call_operand.hbm [shape: bf16[16,384], index: 4, kind: output, shape index: {}]
  %s5 = sld [smem:[#allocation0]]
  $region73: #{linear_ien_forward.1} parent=0
    _
  %s7 = ssub.s32 1, %s5
  %s8 = scalar_select 0, %s7, %s5
  $region1: #{linear_ien_forward.1} parent=0
    #allocation3 [shape = 'u8[512]{0}', space=smem, size = 0x200, scoped, tag = 'input window, operand 0, single buffered']
    #allocation4 [shape = 's32[2]{0}', space=sflag, size = 0x8, scoped, tag = 'scoped memory for linear_ien_forward.1']
    #allocation5 [shape = 's32[2]{0}', space=sflag, size = 0x8, scoped, tag = 'scoped memory for linear_ien_forward.1']
    #allocation6 [shape = 's32[2]{0}', space=sflag, size = 0x8, scoped, tag = 'scoped memory for linear_ien_forward.1']
    #allocation7 [shape = 'u8[8192]{0}', space=vmem, size = 0x2000, scoped, tag = 'input window, operand 1, single buffered']
    #allocation8 [shape = 'u8[524288]{0}', space=vmem, size = 0x80000, scoped, tag = 'input window, operand 2']
    #allocation9 [shape = 's32[2]{0}', space=sflag, size = 0x8, scoped, tag = 'scoped memory for linear_ien_forward.1']
    #allocation10 [shape = 'u8[4096]{0}', space=vmem, size = 0x1000, scoped, tag = 'input window, operand 3']
    #allocation11 [shape = 'u8[8192]{0}', space=vmem, size = 0x2000, scoped, tag = 'output window, operand 0']
    %9 = vsyncpa [#allocation6], 0
    %10 = vsyncpa [#allocation4], 0
    %11 = vsyncpa [#allocation9], 0
    %s12 = scalar_lea.sflag [#allocation9], 1
    %13 = vsyncpa %s12, 0
    %14 = vsyncpa [#allocation5], 0
    %s15 = scalar_lea.sflag [#allocation5], 1
    %16 = vsyncpa %s15, 0
    loop: start=0, step=1, limit=5
    $region2: #{linear_ien_forward.1} parent=1 // loop_pre_header
      _
    $region3: #{linear_ien_forward.1} parent=1 // loop_header
      %s18 = sphi 0, %s22
      %p19 = scmp.ge.s32.totalorder %s18, 5
      %s25 = sphi 0, %s44
      %s26 = sphi 0, %s40
      %s27 = sphi 0, %s36
      %s28 = sphi 0, %s25
      %s29 = sphi 0, %s26
      %s30 = sphi 0, %s27
      %s31 = sphi 0, %s28
      %s32 = sphi 0, %s29
      %s33 = sphi 0, %s30
      %s45 = sphi 0, %s45
      %s47 = sphi 0, %s45
      %s48 = sphi 0, %s47
      %s62 = sphi 0, %s48
      %s70 = sphi 0, %s72
      %s73 = sphi 0, %s70
      %s74 = sphi 0, %s73
      %s90 = sphi 0, %s74
      %s98 = sphi 0, %s100
      %s101 = sphi 0, %s98
      %s102 = sphi 0, %s101
      %s118 = sphi 0, %s102
      %s124 = sphi 0, %s126
      %s127 = sphi 0, %s124
      %s128 = sphi 0, %s127
      %s144 = sphi 0, %s128
      %s152 = sphi 0, %s154
      %s155 = sphi 0, %s152
      %s156 = sphi 0, %s155
      %s172 = sphi 0, %s156
    $region4: #{linear_ien_forward.1} parent=1 // loop_header_branch
      %21 = sbr.rel (%p19) target = $region8
    $region5: #{linear_ien_forward.1} parent=1 // loop_body
      %s23 = ssub.s32 %s18, 1
      %s24 = ssub.s32 %s18, 2
      %s34 = sadd.s32 1, %s27
      %p35 = scmp.ge.s32.totalorder %s34, 1
      %s36 = scalar_select %p35, 0, %s34
      %s37 = sadd.s32 1, %s26
      %s38 = scalar_select %p35, %s37, %s26
      %p39 = scmp.ge.s32.totalorder %s38, 3
      %s40 = scalar_select %p39, 0, %s38
      %s41 = sadd.s32 1, %s25
      %s42 = scalar_select %p39, %s41, %s25
      %p43 = scmp.ge.s32.totalorder %s42, 1
      %s44 = scalar_select %p43, 0, %s42
      %s46 = sadd.s32 %s45, 1
      %p49 = scmp.eq.s32.totalorder %s18, 2
      %p50 = scmp.ne.s32.totalorder %s45, %s47
      %p51 = scmp.eq.s32.totalorder %s18, 0
      %p52 = por %p50, %p51
      %p53 = scmp.ne.s32.totalorder %s45, %s47
      %p54 = scmp.eq.s32.totalorder %s23, 2
      %p55 = por %p53, %p54
      %p56 = scmp.ne.s32.totalorder %s47, %s48
      %p57 = scmp.eq.s32.totalorder %s23, 0
      %p58 = por %p56, %p57
      %p59 = scmp.ne.s32.totalorder %s47, %s48
      %p60 = scmp.eq.s32.totalorder %s24, 2
      %p61 = por %p59, %p60
      %p63 = scmp.ne.s32.totalorder %s48, %s62
      %p64 = scmp.eq.s32.totalorder %s24, 0
      %p65 = por %p63, %p64
      %s66 = ssub.s32 %s25, %s44
      %s67 = ssub.s32 %s27, %s36
      %s68 = sor.u32 %s66, %s67
      %p69 = scmp.eq.s32.totalorder %s68, 0
      %s71 = sadd.s32 %s70, 1
      %s72 = scalar_select %p69, %s70, %s71
      %p75 = pneg %p69
      %p76 = scmp.eq.s32.totalorder %s18, 2
      %p77 = por %p75, %p76
      %p78 = scmp.ne.s32.totalorder %s70, %s73
      %p79 = scmp.eq.s32.totalorder %s18, 0
      %p80 = por %p78, %p79
      %p81 = scmp.ne.s32.totalorder %s70, %s73
      %p82 = scmp.eq.s32.totalorder %s23, 2
      %p83 = por %p81, %p82
      %p84 = scmp.ne.s32.totalorder %s73, %s74
      %p85 = scmp.eq.s32.totalorder %s23, 0
      %p86 = por %p84, %p85
      %p87 = scmp.ne.s32.totalorder %s73, %s74
      %p88 = scmp.eq.s32.totalorder %s24, 2
      %p89 = por %p87, %p88
      %p91 = scmp.ne.s32.totalorder %s74, %s90
      %p92 = scmp.eq.s32.totalorder %s24, 0
      %p93 = por %p91, %p92
      %s94 = ssub.s32 %s27, %s36
      %s95 = ssub.s32 %s26, %s40
      %s96 = sor.u32 %s94, %s95
      %p97 = scmp.eq.s32.totalorder %s96, 0
      %s99 = sadd.s32 %s98, 1
      %s100 = scalar_select %p97, %s98, %s99
      %p103 = pneg %p97
      %p104 = scmp.eq.s32.totalorder %s18, 2
      %p105 = por %p103, %p104
      %p106 = scmp.ne.s32.totalorder %s98, %s101
      %p107 = scmp.eq.s32.totalorder %s18, 0
      %p108 = por %p106, %p107
      %p109 = scmp.ne.s32.totalorder %s98, %s101
      %p110 = scmp.eq.s32.totalorder %s23, 2
      %p111 = por %p109, %p110
      %p112 = scmp.ne.s32.totalorder %s101, %s102
      %p113 = scmp.eq.s32.totalorder %s23, 0
      %p114 = por %p112, %p113
      %p115 = scmp.ne.s32.totalorder %s101, %s102
      %p116 = scmp.eq.s32.totalorder %s24, 2
      %p117 = por %p115, %p116
      %p119 = scmp.ne.s32.totalorder %s102, %s118
      %p120 = scmp.eq.s32.totalorder %s24, 0
      %p121 = por %p119, %p120
      %s122 = ssub.s32 %s26, %s40
      %p123 = scmp.eq.s32.totalorder %s122, 0
      %s125 = sadd.s32 %s124, 1
      %s126 = scalar_select %p123, %s124, %s125
      %p129 = pneg %p123
      %p130 = scmp.eq.s32.totalorder %s18, 2
      %p131 = por %p129, %p130
      %p132 = scmp.ne.s32.totalorder %s124, %s127
      %p133 = scmp.eq.s32.totalorder %s18, 0
      %p134 = por %p132, %p133
      %p135 = scmp.ne.s32.totalorder %s124, %s127
      %p136 = scmp.eq.s32.totalorder %s23, 2
      %p137 = por %p135, %p136
      %p138 = scmp.ne.s32.totalorder %s127, %s128
      %p139 = scmp.eq.s32.totalorder %s23, 0
      %p140 = por %p138, %p139
      %p141 = scmp.ne.s32.totalorder %s127, %s128
      %p142 = scmp.eq.s32.totalorder %s24, 2
      %p143 = por %p141, %p142
      %p145 = scmp.ne.s32.totalorder %s128, %s144
      %p146 = scmp.eq.s32.totalorder %s24, 0
      %p147 = por %p145, %p146
      %s148 = ssub.s32 %s25, %s44
      %s149 = ssub.s32 %s26, %s40
      %s150 = sor.u32 %s148, %s149
      %p151 = scmp.eq.s32.totalorder %s150, 0
      %s153 = sadd.s32 %s152, 1
      %s154 = scalar_select %p151, %s152, %s153
      %p157 = pneg %p151
      %p158 = scmp.eq.s32.totalorder %s18, 2
      %p159 = por %p157, %p158
      %p160 = scmp.ne.s32.totalorder %s152, %s155
      %p161 = scmp.eq.s32.totalorder %s18, 0
      %p162 = por %p160, %p161
      %p163 = scmp.ne.s32.totalorder %s152, %s155
      %p164 = scmp.eq.s32.totalorder %s23, 2
      %p165 = por %p163, %p164
      %p166 = scmp.ne.s32.totalorder %s155, %s156
      %p167 = scmp.eq.s32.totalorder %s23, 0
      %p168 = por %p166, %p167
      %p169 = scmp.ne.s32.totalorder %s155, %s156
      %p170 = scmp.eq.s32.totalorder %s24, 2
      %p171 = por %p169, %p170
      %p173 = scmp.ne.s32.totalorder %s156, %s172
      %p174 = scmp.eq.s32.totalorder %s24, 0
      %p175 = por %p173, %p174
      %p176 = scmp.le.s32.totalorder 1, %s18
      %p177 = scmp.lt.s32.totalorder %s18, 4
      %p178 = pnand %p176, %p177
      %p179 = pneg %p178
      // Predicated region
      $region9: #{linear_ien_forward.1} parent=5 // pred_check
        _
      $region10: #{linear_ien_forward.1} parent=5 // pred_check_branch
        %181 = sbr.rel (%p178) target = $region12
      $region11: #{linear_ien_forward.1} parent=5 // pred_region
        %s182 = ssub.s32 %s18, 1
        // Predicated region
        $region13: #{linear_ien_forward.1} parent=11 // pred_check
          %p183 = pneg %p58
        $region14: #{linear_ien_forward.1} parent=11 // pred_check_branch
          %185 = sbr.rel (%p183) target = $region16
        $region15: #{linear_ien_forward.1} parent=11 // pred_region
          %s187 = ssub.s32 16, 16
          %188 = vsyncadd [#allocation6], %s187
          %191 = dma.hbm_to_smem %s0, 16, [#allocation3], [#allocation6]
        $region16: #{linear_ien_forward.1} parent=11 // pred_fallthru
          _
        // Predicated region
        $region17: #{linear_ien_forward.1} parent=11 // pred_check
          %p192 = pneg %p86
        $region18: #{linear_ien_forward.1} parent=11 // pred_check_branch
          %194 = sbr.rel (%p192) target = $region20
        $region19: #{linear_ien_forward.1} parent=11 // pred_region
          %s195 = smul.u32 2, %s28
          %s196 = smul.u32 2, %s30
          %s198 = ssub.s32 256, 256
          %199 = vsyncadd [#allocation4], %s198
          %s200 = smul.addr %s195, 2
          %s201 = sadd.s32 %s196, %s200
          %s202 = smul.addr %s201, 64
          %s203 = scalar_lea.hbm %s1, %s202
          %s204 = sshll.u32 [#allocation7], 4
          %s205 = int_to_ptr.vmem [resolvable:$true] %s204
          %210 = dma.hbm_to_vmem [thread:$0]  %s203, 256, %s205, [#allocation4], 128, 128, 8
        $region20: #{linear_ien_forward.1} parent=11 // pred_fallthru
          _
      $region12: #{linear_ien_forward.1} parent=5 // pred_fallthru
        _
      %p211 = scmp.lt.s32.totalorder %s18, 3
      // Predicated region
      $region21: #{linear_ien_forward.1} parent=5 // pred_check
        %p212 = pneg %p211
      $region22: #{linear_ien_forward.1} parent=5 // pred_check_branch
        %214 = sbr.rel (%p212) target = $region24
      $region23: #{linear_ien_forward.1} parent=5 // pred_region
        // Predicated region
        $region25: #{linear_ien_forward.1} parent=23 // pred_check
          %p215 = pneg %p108
        $region26: #{linear_ien_forward.1} parent=23 // pred_check_branch
          %217 = sbr.rel (%p215) target = $region28
        $region27: #{linear_ien_forward.1} parent=23 // pred_region
          %s218 = sand.u32 %s18, 1
          %s219 = scalar_lea.sflag [#allocation9], %s218
          %s220 = sand.u32 %s98, 1
          %s221 = smul.addr %s220, 512
          %s222 = scalar_lea.vmem [#allocation8], %s221
          %s223 = smul.u32 32, %s27
          %s225 = ssub.s32 8192, 8192
          %226 = vsyncadd %s219, %s225
          %s227 = smul.addr %s223, 3
          %s228 = sadd.s32 %s26, %s227
          %s229 = smul.addr %s228, 64
          %s230 = scalar_lea.hbm %s2, %s229
          %s231 = sshll.u32 %s222, 4
          %s232 = int_to_ptr.vmem [resolvable:$true] %s231
          %237 = dma.hbm_to_vmem [thread:$0]  %s230, 8192, %s232, %s219, 192, 64, 4
        $region28: #{linear_ien_forward.1} parent=23 // pred_fallthru
          _
        // Predicated region
        $region29: #{linear_ien_forward.1} parent=23 // pred_check
          %p238 = pneg %p134
        $region30: #{linear_ien_forward.1} parent=23 // pred_check_branch
          %240 = sbr.rel (%p238) target = $region32
        $region31: #{linear_ien_forward.1} parent=23 // pred_region
          %s241 = sand.u32 %s18, 1
          %s242 = scalar_lea.sflag [#allocation9], %s241
          %s243 = sand.u32 %s124, 1
          %s244 = smul.addr %s243, 4
          %s245 = scalar_lea.vmem [#allocation10], %s244
          %s247 = ssub.s32 64, 64
          %248 = vsyncadd %s242, %s247
          %s249 = smul.addr %s26, 64
          %s250 = scalar_lea.hbm %s3, %s249
          %s252 = sshll.u32 %s245, 4
          %s253 = int_to_ptr.vmem [resolvable:$true] %s252
          %255 = dma.hbm_to_vmem [thread:$0]  %s250, 64, %s253, %s242
        $region32: #{linear_ien_forward.1} parent=23 // pred_fallthru
          _
      $region24: #{linear_ien_forward.1} parent=5 // pred_fallthru
        _
      %p256 = scmp.le.s32.totalorder 1, %s18
      %p257 = scmp.lt.s32.totalorder %s18, 4
      %p258 = pnand %p256, %p257
      %p259 = pneg %p258
      // Predicated region
      $region33: #{linear_ien_forward.1} parent=5 // pred_check
        _
      $region34: #{linear_ien_forward.1} parent=5 // pred_check_branch
        %261 = sbr.rel (%p258) target = $region36
      $region35: #{linear_ien_forward.1} parent=5 // pred_region
        %s262 = ssub.s32 %s18, 1
        // Predicated region
        $region37: #{linear_ien_forward.1} parent=35 // pred_check
          %p263 = pneg %p58
        $region38: #{linear_ien_forward.1} parent=35 // pred_check_branch
          %265 = sbr.rel (%p263) target = $region40
        $region39: #{linear_ien_forward.1} parent=35 // pred_region
          %266 = dma.done [#allocation6], 16
        $region40: #{linear_ien_forward.1} parent=35 // pred_fallthru
          _
        // Predicated region
        $region41: #{linear_ien_forward.1} parent=35 // pred_check
          %p267 = pneg %p86
        $region42: #{linear_ien_forward.1} parent=35 // pred_check_branch
          %269 = sbr.rel (%p267) target = $region44
        $region43: #{linear_ien_forward.1} parent=35 // pred_region
          %270 = dma.done [#allocation4], 256
        $region44: #{linear_ien_forward.1} parent=35 // pred_fallthru
          _
        %s271 = sand.u32 %s23, 1
        %s272 = scalar_lea.sflag [#allocation9], %s271
        %s273 = sand.u32 %s101, 1
        %s274 = smul.addr %s273, 512
        %s275 = scalar_lea.vmem [#allocation8], %s274
        // Predicated region
        $region45: #{linear_ien_forward.1} parent=35 // pred_check
          %p276 = pneg %p114
        $region46: #{linear_ien_forward.1} parent=35 // pred_check_branch
          %278 = sbr.rel (%p276) target = $region48
        $region47: #{linear_ien_forward.1} parent=35 // pred_region
          %279 = dma.done %s272, 8192
        $region48: #{linear_ien_forward.1} parent=35 // pred_fallthru
          _
        %s280 = sand.u32 %s23, 1
        %s281 = scalar_lea.sflag [#allocation9], %s280
        %s282 = sand.u32 %s127, 1
        %s283 = smul.addr %s282, 4
        %s284 = scalar_lea.vmem [#allocation10], %s283
        // Predicated region
        $region49: #{linear_ien_forward.1} parent=35 // pred_check
          %p285 = pneg %p140
        $region50: #{linear_ien_forward.1} parent=35 // pred_check_branch
          %287 = sbr.rel (%p285) target = $region52
        $region51: #{linear_ien_forward.1} parent=35 // pred_region
          %288 = dma.done %s281, 64
        $region52: #{linear_ien_forward.1} parent=35 // pred_fallthru
          _
        %289 = sfence
        %p290 = pneg %p58
        %p291 = pneg %p55
        %p292 = pneg %p86
        %p293 = pneg %p83
        %s294 = sand.u32 %s23, 1
        %s295 = scalar_lea.sflag [#allocation9], %s294
        %s296 = sand.u32 %s101, 1
        %s297 = smul.addr %s296, 512
        %s298 = scalar_lea.vmem [#allocation8], %s297
        %p299 = pneg %p114
        %p300 = pneg %p111
        %s301 = sand.u32 %s23, 1
        %s302 = scalar_lea.sflag [#allocation9], %s301
        %s303 = sand.u32 %s127, 1
        %s304 = smul.addr %s303, 4
        %s305 = scalar_lea.vmem [#allocation10], %s304
        %p306 = pneg %p140
        %p307 = pneg %p137
        %p308 = pneg %p168
        %p309 = pneg %p165
        %s310 = sand.u32 %s155, 1
        %s311 = scalar_lea.sflag [#allocation5], %s310
        %s312 = sand.u32 %s155, 1
        %s313 = smul.addr %s312, 8
        %s314 = scalar_lea.vmem [#allocation11], %s313
        %s315 = smul.u32 2, %s28
        %s316 = smul.u32 2, %s30
        %s317 = smul.u32 32, %s30
        %s318 = smul.u32 2, %s28
        %p320 = scmp.eq.s32.totalorder %s30, 0
        // Predicated region
        $region53: #{linear_ien_forward.1} parent=35 // pred_check
          %p321 = pneg %p320
        $region54: #{linear_ien_forward.1} parent=35 // pred_check_branch
          %323 = sbr.rel (%p321) target = $region56
        $region55: #{linear_ien_forward.1} parent=35 // pred_region
          %324 = vst [vmem:[#allocation2] sm:$0xff] 0.0
          %325 = vst [vmem:[#allocation2 + $0x8] sm:$0xff] 0.0
        $region56: #{linear_ien_forward.1} parent=35 // pred_fallthru
          _
        %s326 = sld [smem:[#allocation3]]
        %v327 = vld [vmem:[%s275] sm:$0xf]
        %v328 = vld [vmem:[%s275 + $0x4] sm:$0xf]
        %v329 = vld [vmem:[%s275 + $0x8] sm:$0xf]
        %v330 = vld [vmem:[%s275 + $0xc] sm:$0xf]
        %v331 = vld [vmem:[%s275 + $0x10] sm:$0xf]
        %v332 = vld [vmem:[%s275 + $0x14] sm:$0xf]
        %v333 = vld [vmem:[%s275 + $0x18] sm:$0xf]
        %v334 = vld [vmem:[%s275 + $0x1c] sm:$0xf]
        %v335 = vld [vmem:[%s275 + $0x20] sm:$0xf]
        %v336 = vld [vmem:[%s275 + $0x24] sm:$0xf]
        %v337 = vld [vmem:[%s275 + $0x28] sm:$0xf]
        %v338 = vld [vmem:[%s275 + $0x2c] sm:$0xf]
        %v339 = vld [vmem:[%s275 + $0x30] sm:$0xf]
        %v340 = vld [vmem:[%s275 + $0x34] sm:$0xf]
        %v341 = vld [vmem:[%s275 + $0x38] sm:$0xf]
        %v342 = vld [vmem:[%s275 + $0x3c] sm:$0xf]
        %v343 = vld [vmem:[%s275 + $0x40] sm:$0xf]
        %v344 = vld [vmem:[%s275 + $0x44] sm:$0xf]
        %v345 = vld [vmem:[%s275 + $0x48] sm:$0xf]
        %v346 = vld [vmem:[%s275 + $0x4c] sm:$0xf]
        %v347 = vld [vmem:[%s275 + $0x50] sm:$0xf]
        %v348 = vld [vmem:[%s275 + $0x54] sm:$0xf]
        %v349 = vld [vmem:[%s275 + $0x58] sm:$0xf]
        %v350 = vld [vmem:[%s275 + $0x5c] sm:$0xf]
        %v351 = vld [vmem:[%s275 + $0x60] sm:$0xf]
        %v352 = vld [vmem:[%s275 + $0x64] sm:$0xf]
        %v353 = vld [vmem:[%s275 + $0x68] sm:$0xf]
        %v354 = vld [vmem:[%s275 + $0x6c] sm:$0xf]
        %v355 = vld [vmem:[%s275 + $0x70] sm:$0xf]
        %v356 = vld [vmem:[%s275 + $0x74] sm:$0xf]
        %v357 = vld [vmem:[%s275 + $0x78] sm:$0xf]
        %v358 = vld [vmem:[%s275 + $0x7c] sm:$0xf]
        %v359 = vunpack.c.l.bf16 %v327
        %v360 = vunpack.c.l.bf16 %v328
        %v361 = vunpack.c.l.bf16 %v329
        %v362 = vunpack.c.l.bf16 %v330
        %v363 = vunpack.c.l.bf16 %v331
        %v364 = vunpack.c.l.bf16 %v332
        %v365 = vunpack.c.l.bf16 %v333
        %v366 = vunpack.c.l.bf16 %v334
        %v367 = vunpack.c.l.bf16 %v335
        %v368 = vunpack.c.l.bf16 %v336
        %v369 = vunpack.c.l.bf16 %v337
        %v370 = vunpack.c.l.bf16 %v338
        %v371 = vunpack.c.l.bf16 %v339
        %v372 = vunpack.c.l.bf16 %v340
        %v373 = vunpack.c.l.bf16 %v341
        %v374 = vunpack.c.l.bf16 %v342
        %v375 = vunpack.c.l.bf16 %v343
        %v376 = vunpack.c.l.bf16 %v344
        %v377 = vunpack.c.l.bf16 %v345
        %v378 = vunpack.c.l.bf16 %v346
        %v379 = vunpack.c.l.bf16 %v347
        %v380 = vunpack.c.l.bf16 %v348
        %v381 = vunpack.c.l.bf16 %v349
        %v382 = vunpack.c.l.bf16 %v350
        %v383 = vunpack.c.l.bf16 %v351
        %v384 = vunpack.c.l.bf16 %v352
        %v385 = vunpack.c.l.bf16 %v353
        %v386 = vunpack.c.l.bf16 %v354
        %v387 = vunpack.c.l.bf16 %v355
        %v388 = vunpack.c.l.bf16 %v356
        %v389 = vunpack.c.l.bf16 %v357
        %v390 = vunpack.c.l.bf16 %v358
        %v391 = vstv %s326
        %v392 = vmul.f32 %v391, %v359
        %v393 = vmul.f32 %v391, %v360
        %v394 = vmul.f32 %v391, %v361
        %v395 = vmul.f32 %v391, %v362
        %v396 = vmul.f32 %v391, %v363
        %v397 = vmul.f32 %v391, %v364
        %v398 = vmul.f32 %v391, %v365
        %v399 = vmul.f32 %v391, %v366
        %v400 = vmul.f32 %v391, %v367
        %v401 = vmul.f32 %v391, %v368
        %v402 = vmul.f32 %v391, %v369
        %v403 = vmul.f32 %v391, %v370
        %v404 = vmul.f32 %v391, %v371
        %v405 = vmul.f32 %v391, %v372
        %v406 = vmul.f32 %v391, %v373
        %v407 = vmul.f32 %v391, %v374
        %v408 = vmul.f32 %v391, %v375
        %v409 = vmul.f32 %v391, %v376
        %v410 = vmul.f32 %v391, %v377
        %v411 = vmul.f32 %v391, %v378
        %v412 = vmul.f32 %v391, %v379
        %v413 = vmul.f32 %v391, %v380
        %v414 = vmul.f32 %v391, %v381
        %v415 = vmul.f32 %v391, %v382
        %v416 = vmul.f32 %v391, %v383
        %v417 = vmul.f32 %v391, %v384
        %v418 = vmul.f32 %v391, %v385
        %v419 = vmul.f32 %v391, %v386
        %v420 = vmul.f32 %v391, %v387
        %v421 = vmul.f32 %v391, %v388
        %v422 = vmul.f32 %v391, %v389
        %v423 = vmul.f32 %v391, %v390
        %s424 = sld [smem:[#allocation3 + $0x1]]
        %s425 = scalar_lea.vmem %s275, 128 [#allocation8]
        %v426 = vld [vmem:[%s425] sm:$0xf]
        %v427 = vld [vmem:[%s425 + $0x4] sm:$0xf]
        %v428 = vld [vmem:[%s425 + $0x8] sm:$0xf]
        %v429 = vld [vmem:[%s425 + $0xc] sm:$0xf]
        %v430 = vld [vmem:[%s425 + $0x10] sm:$0xf]
        %v431 = vld [vmem:[%s425 + $0x14] sm:$0xf]
        %v432 = vld [vmem:[%s425 + $0x18] sm:$0xf]
        %v433 = vld [vmem:[%s425 + $0x1c] sm:$0xf]
        %v434 = vld [vmem:[%s425 + $0x20] sm:$0xf]
        %v435 = vld [vmem:[%s425 + $0x24] sm:$0xf]
        %v436 = vld [vmem:[%s425 + $0x28] sm:$0xf]
        %v437 = vld [vmem:[%s425 + $0x2c] sm:$0xf]
        %v438 = vld [vmem:[%s425 + $0x30] sm:$0xf]
        %v439 = vld [vmem:[%s425 + $0x34] sm:$0xf]
        %v440 = vld [vmem:[%s425 + $0x38] sm:$0xf]
        %v441 = vld [vmem:[%s425 + $0x3c] sm:$0xf]
        %v442 = vld [vmem:[%s425 + $0x40] sm:$0xf]
        %v443 = vld [vmem:[%s425 + $0x44] sm:$0xf]
        %v444 = vld [vmem:[%s425 + $0x48] sm:$0xf]
        %v445 = vld [vmem:[%s425 + $0x4c] sm:$0xf]
        %v446 = vld [vmem:[%s425 + $0x50] sm:$0xf]
        %v447 = vld [vmem:[%s425 + $0x54] sm:$0xf]
        %v448 = vld [vmem:[%s425 + $0x58] sm:$0xf]
        %v449 = vld [vmem:[%s425 + $0x5c] sm:$0xf]
        %v450 = vld [vmem:[%s425 + $0x60] sm:$0xf]
        %v451 = vld [vmem:[%s425 + $0x64] sm:$0xf]
        %v452 = vld [vmem:[%s425 + $0x68] sm:$0xf]
        %v453 = vld [vmem:[%s425 + $0x6c] sm:$0xf]
        %v454 = vld [vmem:[%s425 + $0x70] sm:$0xf]
        %v455 = vld [vmem:[%s425 + $0x74] sm:$0xf]
        %v456 = vld [vmem:[%s425 + $0x78] sm:$0xf]
        %v457 = vld [vmem:[%s425 + $0x7c] sm:$0xf]
        %v458 = vunpack.c.l.bf16 %v426
        %v459 = vunpack.c.l.bf16 %v427
        %v460 = vunpack.c.l.bf16 %v428
        %v461 = vunpack.c.l.bf16 %v429
        %v462 = vunpack.c.l.bf16 %v430
        %v463 = vunpack.c.l.bf16 %v431
        %v464 = vunpack.c.l.bf16 %v432
        %v465 = vunpack.c.l.bf16 %v433
        %v466 = vunpack.c.l.bf16 %v434
        %v467 = vunpack.c.l.bf16 %v435
        %v468 = vunpack.c.l.bf16 %v436
        %v469 = vunpack.c.l.bf16 %v437
        %v470 = vunpack.c.l.bf16 %v438
        %v471 = vunpack.c.l.bf16 %v439
        %v472 = vunpack.c.l.bf16 %v440
        %v473 = vunpack.c.l.bf16 %v441
        %v474 = vunpack.c.l.bf16 %v442
        %v475 = vunpack.c.l.bf16 %v443
        %v476 = vunpack.c.l.bf16 %v444
        %v477 = vunpack.c.l.bf16 %v445
        %v478 = vunpack.c.l.bf16 %v446
        %v479 = vunpack.c.l.bf16 %v447
        %v480 = vunpack.c.l.bf16 %v448
        %v481 = vunpack.c.l.bf16 %v449
        %v482 = vunpack.c.l.bf16 %v450
        %v483 = vunpack.c.l.bf16 %v451
        %v484 = vunpack.c.l.bf16 %v452
        %v485 = vunpack.c.l.bf16 %v453
        %v486 = vunpack.c.l.bf16 %v454
        %v487 = vunpack.c.l.bf16 %v455
        %v488 = vunpack.c.l.bf16 %v456
        %v489 = vunpack.c.l.bf16 %v457
        %v490 = vstv %s424
        %v491 = vmul.f32 %v490, %v458
        %v492 = vmul.f32 %v490, %v459
        %v493 = vmul.f32 %v490, %v460
        %v494 = vmul.f32 %v490, %v461
        %v495 = vmul.f32 %v490, %v462
        %v496 = vmul.f32 %v490, %v463
        %v497 = vmul.f32 %v490, %v464
        %v498 = vmul.f32 %v490, %v465
        %v499 = vmul.f32 %v490, %v466
        %v500 = vmul.f32 %v490, %v467
        %v501 = vmul.f32 %v490, %v468
        %v502 = vmul.f32 %v490, %v469
        %v503 = vmul.f32 %v490, %v470
        %v504 = vmul.f32 %v490, %v471
        %v505 = vmul.f32 %v490, %v472
        %v506 = vmul.f32 %v490, %v473
        %v507 = vmul.f32 %v490, %v474
        %v508 = vmul.f32 %v490, %v475
        %v509 = vmul.f32 %v490, %v476
        %v510 = vmul.f32 %v490, %v477
        %v511 = vmul.f32 %v490, %v478
        %v512 = vmul.f32 %v490, %v479
        %v513 = vmul.f32 %v490, %v480
        %v514 = vmul.f32 %v490, %v481
        %v515 = vmul.f32 %v490, %v482
        %v516 = vmul.f32 %v490, %v483
        %v517 = vmul.f32 %v490, %v484
        %v518 = vmul.f32 %v490, %v485
        %v519 = vmul.f32 %v490, %v486
        %v520 = vmul.f32 %v490, %v487
        %v521 = vmul.f32 %v490, %v488
        %v522 = vmul.f32 %v490, %v489
        %v523 = vadd.f32 %v392, %v491
        %v524 = vadd.f32 %v393, %v492
        %v525 = vadd.f32 %v394, %v493
        %v526 = vadd.f32 %v395, %v494
        %v527 = vadd.f32 %v396, %v495
        %v528 = vadd.f32 %v397, %v496
        %v529 = vadd.f32 %v398, %v497
        %v530 = vadd.f32 %v399, %v498
        %v531 = vadd.f32 %v400, %v499
        %v532 = vadd.f32 %v401, %v500
        %v533 = vadd.f32 %v402, %v501
        %v534 = vadd.f32 %v403, %v502
        %v535 = vadd.f32 %v404, %v503
        %v536 = vadd.f32 %v405, %v504
        %v537 = vadd.f32 %v406, %v505
        %v538 = vadd.f32 %v407, %v506
        %v539 = vadd.f32 %v408, %v507
        %v540 = vadd.f32 %v409, %v508
        %v541 = vadd.f32 %v410, %v509
        %v542 = vadd.f32 %v411, %v510
        %v543 = vadd.f32 %v412, %v511
        %v544 = vadd.f32 %v413, %v512
        %v545 = vadd.f32 %v414, %v513
        %v546 = vadd.f32 %v415, %v514
        %v547 = vadd.f32 %v416, %v515
        %v548 = vadd.f32 %v417, %v516
        %v549 = vadd.f32 %v418, %v517
        %v550 = vadd.f32 %v419, %v518
        %v551 = vadd.f32 %v420, %v519
        %v552 = vadd.f32 %v421, %v520
        %v553 = vadd.f32 %v422, %v521
        %v554 = vadd.f32 %v423, %v522
        %s555 = sld [smem:[#allocation3 + $0x2]]
        %s556 = scalar_lea.vmem %s275, 256 [#allocation8]
        %v557 = vld [vmem:[%s556] sm:$0xf]
        %v558 = vld [vmem:[%s556 + $0x4] sm:$0xf]
        %v559 = vld [vmem:[%s556 + $0x8] sm:$0xf]
        %v560 = vld [vmem:[%s556 + $0xc] sm:$0xf]
        %v561 = vld [vmem:[%s556 + $0x10] sm:$0xf]
        %v562 = vld [vmem:[%s556 + $0x14] sm:$0xf]
        %v563 = vld [vmem:[%s556 + $0x18] sm:$0xf]
        %v564 = vld [vmem:[%s556 + $0x1c] sm:$0xf]
        %v565 = vld [vmem:[%s556 + $0x20] sm:$0xf]
        %v566 = vld [vmem:[%s556 + $0x24] sm:$0xf]
        %v567 = vld [vmem:[%s556 + $0x28] sm:$0xf]
        %v568 = vld [vmem:[%s556 + $0x2c] sm:$0xf]
        %v569 = vld [vmem:[%s556 + $0x30] sm:$0xf]
        %v570 = vld [vmem:[%s556 + $0x34] sm:$0xf]
        %v571 = vld [vmem:[%s556 + $0x38] sm:$0xf]
        %v572 = vld [vmem:[%s556 + $0x3c] sm:$0xf]
        %v573 = vld [vmem:[%s556 + $0x40] sm:$0xf]
        %v574 = vld [vmem:[%s556 + $0x44] sm:$0xf]
        %v575 = vld [vmem:[%s556 + $0x48] sm:$0xf]
        %v576 = vld [vmem:[%s556 + $0x4c] sm:$0xf]
        %v577 = vld [vmem:[%s556 + $0x50] sm:$0xf]
        %v578 = vld [vmem:[%s556 + $0x54] sm:$0xf]
        %v579 = vld [vmem:[%s556 + $0x58] sm:$0xf]
        %v580 = vld [vmem:[%s556 + $0x5c] sm:$0xf]
        %v581 = vld [vmem:[%s556 + $0x60] sm:$0xf]
        %v582 = vld [vmem:[%s556 + $0x64] sm:$0xf]
        %v583 = vld [vmem:[%s556 + $0x68] sm:$0xf]
        %v584 = vld [vmem:[%s556 + $0x6c] sm:$0xf]
        %v585 = vld [vmem:[%s556 + $0x70] sm:$0xf]
        %v586 = vld [vmem:[%s556 + $0x74] sm:$0xf]
        %v587 = vld [vmem:[%s556 + $0x78] sm:$0xf]
        %v588 = vld [vmem:[%s556 + $0x7c] sm:$0xf]
        %v589 = vunpack.c.l.bf16 %v557
        %v590 = vunpack.c.l.bf16 %v558
        %v591 = vunpack.c.l.bf16 %v559
        %v592 = vunpack.c.l.bf16 %v560
        %v593 = vunpack.c.l.bf16 %v561
        %v594 = vunpack.c.l.bf16 %v562
        %v595 = vunpack.c.l.bf16 %v563
        %v596 = vunpack.c.l.bf16 %v564
        %v597 = vunpack.c.l.bf16 %v565
        %v598 = vunpack.c.l.bf16 %v566
        %v599 = vunpack.c.l.bf16 %v567
        %v600 = vunpack.c.l.bf16 %v568
        %v601 = vunpack.c.l.bf16 %v569
        %v602 = vunpack.c.l.bf16 %v570
        %v603 = vunpack.c.l.bf16 %v571
        %v604 = vunpack.c.l.bf16 %v572
        %v605 = vunpack.c.l.bf16 %v573
        %v606 = vunpack.c.l.bf16 %v574
        %v607 = vunpack.c.l.bf16 %v575
        %v608 = vunpack.c.l.bf16 %v576
        %v609 = vunpack.c.l.bf16 %v577
        %v610 = vunpack.c.l.bf16 %v578
        %v611 = vunpack.c.l.bf16 %v579
        %v612 = vunpack.c.l.bf16 %v580
        %v613 = vunpack.c.l.bf16 %v581
        %v614 = vunpack.c.l.bf16 %v582
        %v615 = vunpack.c.l.bf16 %v583
        %v616 = vunpack.c.l.bf16 %v584
        %v617 = vunpack.c.l.bf16 %v585
        %v618 = vunpack.c.l.bf16 %v586
        %v619 = vunpack.c.l.bf16 %v587
        %v620 = vunpack.c.l.bf16 %v588
        %v621 = vstv %s555
        %v622 = vmul.f32 %v621, %v589
        %v623 = vmul.f32 %v621, %v590
        %v624 = vmul.f32 %v621, %v591
        %v625 = vmul.f32 %v621, %v592
        %v626 = vmul.f32 %v621, %v593
        %v627 = vmul.f32 %v621, %v594
        %v628 = vmul.f32 %v621, %v595
        %v629 = vmul.f32 %v621, %v596
        %v630 = vmul.f32 %v621, %v597
        %v631 = vmul.f32 %v621, %v598
        %v632 = vmul.f32 %v621, %v599
        %v633 = vmul.f32 %v621, %v600
        %v634 = vmul.f32 %v621, %v601
        %v635 = vmul.f32 %v621, %v602
        %v636 = vmul.f32 %v621, %v603
        %v637 = vmul.f32 %v621, %v604
        %v638 = vmul.f32 %v621, %v605
        %v639 = vmul.f32 %v621, %v606
        %v640 = vmul.f32 %v621, %v607
        %v641 = vmul.f32 %v621, %v608
        %v642 = vmul.f32 %v621, %v609
        %v643 = vmul.f32 %v621, %v610
        %v644 = vmul.f32 %v621, %v611
        %v645 = vmul.f32 %v621, %v612
        %v646 = vmul.f32 %v621, %v613
        %v647 = vmul.f32 %v621, %v614
        %v648 = vmul.f32 %v621, %v615
        %v649 = vmul.f32 %v621, %v616
        %v650 = vmul.f32 %v621, %v617
        %v651 = vmul.f32 %v621, %v618
        %v652 = vmul.f32 %v621, %v619
        %v653 = vmul.f32 %v621, %v620
        %v654 = vadd.f32 %v523, %v622
        %v655 = vadd.f32 %v524, %v623
        %v656 = vadd.f32 %v525, %v624
        %v657 = vadd.f32 %v526, %v625
        %v658 = vadd.f32 %v527, %v626
        %v659 = vadd.f32 %v528, %v627
        %v660 = vadd.f32 %v529, %v628
        %v661 = vadd.f32 %v530, %v629
        %v662 = vadd.f32 %v531, %v630
        %v663 = vadd.f32 %v532, %v631
        %v664 = vadd.f32 %v533, %v632
        %v665 = vadd.f32 %v534, %v633
        %v666 = vadd.f32 %v535, %v634
        %v667 = vadd.f32 %v536, %v635
        %v668 = vadd.f32 %v537, %v636
        %v669 = vadd.f32 %v538, %v637
        %v670 = vadd.f32 %v539, %v638
        %v671 = vadd.f32 %v540, %v639
        %v672 = vadd.f32 %v541, %v640
        %v673 = vadd.f32 %v542, %v641
        %v674 = vadd.f32 %v543, %v642
        %v675 = vadd.f32 %v544, %v643
        %v676 = vadd.f32 %v545, %v644
        %v677 = vadd.f32 %v546, %v645
        %v678 = vadd.f32 %v547, %v646
        %v679 = vadd.f32 %v548, %v647
        %v680 = vadd.f32 %v549, %v648
        %v681 = vadd.f32 %v550, %v649
        %v682 = vadd.f32 %v551, %v650
        %v683 = vadd.f32 %v552, %v651
        %v684 = vadd.f32 %v553, %v652
        %v685 = vadd.f32 %v554, %v653
        %s686 = sld [smem:[#allocation3 + $0x3]]
        %s687 = scalar_lea.vmem %s275, 384 [#allocation8]
        %v688 = vld [vmem:[%s687] sm:$0xf]
        %v689 = vld [vmem:[%s687 + $0x4] sm:$0xf]
        %v690 = vld [vmem:[%s687 + $0x8] sm:$0xf]
        %v691 = vld [vmem:[%s687 + $0xc] sm:$0xf]
        %v692 = vld [vmem:[%s687 + $0x10] sm:$0xf]
        %v693 = vld [vmem:[%s687 + $0x14] sm:$0xf]
        %v694 = vld [vmem:[%s687 + $0x18] sm:$0xf]
        %v695 = vld [vmem:[%s687 + $0x1c] sm:$0xf]
        %v696 = vld [vmem:[%s687 + $0x20] sm:$0xf]
        %v697 = vld [vmem:[%s687 + $0x24] sm:$0xf]
        %v698 = vld [vmem:[%s687 + $0x28] sm:$0xf]
        %v699 = vld [vmem:[%s687 + $0x2c] sm:$0xf]
        %v700 = vld [vmem:[%s687 + $0x30] sm:$0xf]
        %v701 = vld [vmem:[%s687 + $0x34] sm:$0xf]
        %v702 = vld [vmem:[%s687 + $0x38] sm:$0xf]
        %v703 = vld [vmem:[%s687 + $0x3c] sm:$0xf]
        %v704 = vld [vmem:[%s687 + $0x40] sm:$0xf]
        %v705 = vld [vmem:[%s687 + $0x44] sm:$0xf]
        %v706 = vld [vmem:[%s687 + $0x48] sm:$0xf]
        %v707 = vld [vmem:[%s687 + $0x4c] sm:$0xf]
        %v708 = vld [vmem:[%s687 + $0x50] sm:$0xf]
        %v709 = vld [vmem:[%s687 + $0x54] sm:$0xf]
        %v710 = vld [vmem:[%s687 + $0x58] sm:$0xf]
        %v711 = vld [vmem:[%s687 + $0x5c] sm:$0xf]
        %v712 = vld [vmem:[%s687 + $0x60] sm:$0xf]
        %v713 = vld [vmem:[%s687 + $0x64] sm:$0xf]
        %v714 = vld [vmem:[%s687 + $0x68] sm:$0xf]
        %v715 = vld [vmem:[%s687 + $0x6c] sm:$0xf]
        %v716 = vld [vmem:[%s687 + $0x70] sm:$0xf]
        %v717 = vld [vmem:[%s687 + $0x74] sm:$0xf]
        %v718 = vld [vmem:[%s687 + $0x78] sm:$0xf]
        %v719 = vld [vmem:[%s687 + $0x7c] sm:$0xf]
        %v720 = vunpack.c.l.bf16 %v688
        %v721 = vunpack.c.l.bf16 %v689
        %v722 = vunpack.c.l.bf16 %v690
        %v723 = vunpack.c.l.bf16 %v691
        %v724 = vunpack.c.l.bf16 %v692
        %v725 = vunpack.c.l.bf16 %v693
        %v726 = vunpack.c.l.bf16 %v694
        %v727 = vunpack.c.l.bf16 %v695
        %v728 = vunpack.c.l.bf16 %v696
        %v729 = vunpack.c.l.bf16 %v697
        %v730 = vunpack.c.l.bf16 %v698
        %v731 = vunpack.c.l.bf16 %v699
        %v732 = vunpack.c.l.bf16 %v700
        %v733 = vunpack.c.l.bf16 %v701
        %v734 = vunpack.c.l.bf16 %v702
        %v735 = vunpack.c.l.bf16 %v703
        %v736 = vunpack.c.l.bf16 %v704
        %v737 = vunpack.c.l.bf16 %v705
        %v738 = vunpack.c.l.bf16 %v706
        %v739 = vunpack.c.l.bf16 %v707
        %v740 = vunpack.c.l.bf16 %v708
        %v741 = vunpack.c.l.bf16 %v709
        %v742 = vunpack.c.l.bf16 %v710
        %v743 = vunpack.c.l.bf16 %v711
        %v744 = vunpack.c.l.bf16 %v712
        %v745 = vunpack.c.l.bf16 %v713
        %v746 = vunpack.c.l.bf16 %v714
        %v747 = vunpack.c.l.bf16 %v715
        %v748 = vunpack.c.l.bf16 %v716
        %v749 = vunpack.c.l.bf16 %v717
        %v750 = vunpack.c.l.bf16 %v718
        %v751 = vunpack.c.l.bf16 %v719
        %v752 = vstv %s686
        %v753 = vmul.f32 %v752, %v720
        %v754 = vmul.f32 %v752, %v721
        %v755 = vmul.f32 %v752, %v722
        %v756 = vmul.f32 %v752, %v723
        %v757 = vmul.f32 %v752, %v724
        %v758 = vmul.f32 %v752, %v725
        %v759 = vmul.f32 %v752, %v726
        %v760 = vmul.f32 %v752, %v727
        %v761 = vmul.f32 %v752, %v728
        %v762 = vmul.f32 %v752, %v729
        %v763 = vmul.f32 %v752, %v730
        %v764 = vmul.f32 %v752, %v731
        %v765 = vmul.f32 %v752, %v732
        %v766 = vmul.f32 %v752, %v733
        %v767 = vmul.f32 %v752, %v734
        %v768 = vmul.f32 %v752, %v735
        %v769 = vmul.f32 %v752, %v736
        %v770 = vmul.f32 %v752, %v737
        %v771 = vmul.f32 %v752, %v738
        %v772 = vmul.f32 %v752, %v739
        %v773 = vmul.f32 %v752, %v740
        %v774 = vmul.f32 %v752, %v741
        %v775 = vmul.f32 %v752, %v742
        %v776 = vmul.f32 %v752, %v743
        %v777 = vmul.f32 %v752, %v744
        %v778 = vmul.f32 %v752, %v745
        %v779 = vmul.f32 %v752, %v746
        %v780 = vmul.f32 %v752, %v747
        %v781 = vmul.f32 %v752, %v748
        %v782 = vmul.f32 %v752, %v749
        %v783 = vmul.f32 %v752, %v750
        %v784 = vmul.f32 %v752, %v751
        %v785 = vadd.f32 %v654, %v753
        %v786 = vadd.f32 %v655, %v754
        %v787 = vadd.f32 %v656, %v755
        %v788 = vadd.f32 %v657, %v756
        %v789 = vadd.f32 %v658, %v757
        %v790 = vadd.f32 %v659, %v758
        %v791 = vadd.f32 %v660, %v759
        %v792 = vadd.f32 %v661, %v760
        %v793 = vadd.f32 %v662, %v761
        %v794 = vadd.f32 %v663, %v762
        %v795 = vadd.f32 %v664, %v763
        %v796 = vadd.f32 %v665, %v764
        %v797 = vadd.f32 %v666, %v765
        %v798 = vadd.f32 %v667, %v766
        %v799 = vadd.f32 %v668, %v767
        %v800 = vadd.f32 %v669, %v768
        %v801 = vadd.f32 %v670, %v769
        %v802 = vadd.f32 %v671, %v770
        %v803 = vadd.f32 %v672, %v771
        %v804 = vadd.f32 %v673, %v772
        %v805 = vadd.f32 %v674, %v773
        %v806 = vadd.f32 %v675, %v774
        %v807 = vadd.f32 %v676, %v775
        %v808 = vadd.f32 %v677, %v776
        %v809 = vadd.f32 %v678, %v777
        %v810 = vadd.f32 %v679, %v778
        %v811 = vadd.f32 %v680, %v779
        %v812 = vadd.f32 %v681, %v780
        %v813 = vadd.f32 %v682, %v781
        %v814 = vadd.f32 %v683, %v782
        %v815 = vadd.f32 %v684, %v783
        %v816 = vadd.f32 %v685, %v784
        %v817 = vld [vmem:[#allocation2] sm:$0xff]
        %v818 = vld [vmem:[#allocation2 + $0x8] sm:$0xff]
        %v819 = vld [vmem:[#allocation7] sm:$0xff]
        %v820 = vld [vmem:[#allocation7 + $0x8] sm:$0xff]
        %v821 = vpack.c.bf16 %v786, %v785
        %v822 = vpack.c.bf16 %v788, %v787
        %v823 = vpack.c.bf16 %v790, %v789
        %v824 = vpack.c.bf16 %v792, %v791
        %v825 = vpack.c.bf16 %v794, %v793
        %v826 = vpack.c.bf16 %v796, %v795
        %v827 = vpack.c.bf16 %v798, %v797
        %v828 = vpack.c.bf16 %v800, %v799
        %v829 = vpack.c.bf16 %v802, %v801
        %v830 = vpack.c.bf16 %v804, %v803
        %v831 = vpack.c.bf16 %v806, %v805
        %v832 = vpack.c.bf16 %v808, %v807
        %v833 = vpack.c.bf16 %v810, %v809
        %v834 = vpack.c.bf16 %v812, %v811
        %v835 = vpack.c.bf16 %v814, %v813
        %v836 = vpack.c.bf16 %v816, %v815
        %v839 = vunpack.c.l.b16 %v819
        %v840 = vunpack.c.h.b16 %v819
        %v841 = vunpack.c.l.b16 %v820
        %v842 = vunpack.c.h.b16 %v820
        %v843 = vpack.c.b16 %v841, %v839
        %v844 = vpack.c.b16 %v842, %v840
        %847 = vmatprep.subr.bf16.mxu0 0
        %848 = vmatpush1.bf16.msra.mxu0 %v821
        %849 = vmatprep.subr.bf16.mxu0 0
        %850 = vmatpush1.bf16.msra.mxu0 %v822
        %851 = vmatprep.subr.bf16.mxu0 0
        %852 = vmatpush1.bf16.msra.mxu0 %v823
        %853 = vmatprep.subr.bf16.mxu0 0
        %854 = vmatpush1.bf16.msra.mxu0 %v824
        %855 = vmatprep.subr.bf16.mxu0 0
        %856 = vmatpush1.bf16.msra.mxu0 %v825
        %857 = vmatprep.subr.bf16.mxu0 0
        %858 = vmatpush1.bf16.msra.mxu0 %v826
        %859 = vmatprep.subr.bf16.mxu0 0
        %860 = vmatpush1.bf16.msra.mxu0 %v827
        %861 = vmatprep.subr.bf16.mxu0 0
        %862 = vmatpush1.bf16.msra.mxu0 %v828
        %863 = vmatprep.subr.bf16.mxu0 0
        %864 = vmatpush1.bf16.msra.mxu0 %v829
        %865 = vmatprep.subr.bf16.mxu0 0
        %866 = vmatpush1.bf16.msra.mxu0 %v830
        %867 = vmatprep.subr.bf16.mxu0 0
        %868 = vmatpush1.bf16.msra.mxu0 %v831
        %869 = vmatprep.subr.bf16.mxu0 0
        %870 = vmatpush1.bf16.msra.mxu0 %v832
        %871 = vmatprep.subr.bf16.mxu0 0
        %872 = vmatpush1.bf16.msra.mxu0 %v833
        %873 = vmatprep.subr.bf16.mxu0 0
        %874 = vmatpush1.bf16.msra.mxu0 %v834
        %875 = vmatprep.subr.bf16.mxu0 0
        %876 = vmatpush1.bf16.msra.mxu0 %v835
        %877 = vmatprep.subr.bf16.mxu0 0
        %878 = vmatpush1.bf16.msra.mxu0 %v836
        %879 = vmatprep.mubr.bf16.mxu0 %v844
        %880 = vmatmul.mubr.bf16.gmra.mrb[0].mxu0 %v843
        %v881 = vpop.f32.mrb[0].mxu0
        %v882 = vadd.f32 0.0, %v881
        %v883 = vpop.f32.mrb[0].mxu0
        %v884 = vpop.f32.mrb[0].mxu0
        %v885 = vadd.f32 0.0, %v884
        %v886 = vpop.f32.mrb[0].mxu0
        %887 = vdwg.mxu0
        %v888 = vadd.f32 %v817, %v882
        %v889 = vadd.f32 %v818, %v885
        %890 = vst [vmem:[#allocation2] sm:$0xff] %v888
        %891 = vst [vmem:[#allocation2 + $0x8] sm:$0xff] %v889
        // Predicated region
        $region57: #{linear_ien_forward.1} parent=35 // pred_check
          %p892 = pneg %p320
        $region58: #{linear_ien_forward.1} parent=35 // pred_check_branch
          %894 = sbr.rel (%p892) target = $region60
        $region59: #{linear_ien_forward.1} parent=35 // pred_region
          %v895 = vld [vmem:[%s284] sm:$0xf]
          %s896 = sld [smem:[#allocation3]]
          %v897 = vstv %s896
          %v898 = vmul.f32 %v897, %v895
          %s899 = sld [smem:[#allocation3 + $0x1]]
          %v900 = vstv %s899
          %v901 = vmul.f32 %v900, %v895
          %v903 = vrot.slane %v901, 1
          %v905 = vadd.f32 %v898, %v903
          %s906 = sld [smem:[#allocation3 + $0x2]]
          %v907 = vstv %s906
          %v908 = vmul.f32 %v907, %v895
          %v910 = vrot.slane %v908, 2
          %v912 = vadd.f32 %v905, %v910
          %s913 = sld [smem:[#allocation3 + $0x3]]
          %v914 = vstv %s913
          %v915 = vmul.f32 %v914, %v895
          %v917 = vrot.slane %v915, 3
          %v919 = vadd.f32 %v912, %v917
          %v920 = vld [vmem:[#allocation2] sm:$0xff]
          %v921 = vld [vmem:[#allocation2 + $0x8] sm:$0xff]
          %v922 = vlaneseq
          %v923 = vshrl.u32 %v922, 7
          %v924 = vsub.s32 0, %v923
          %v925 = vrot.slane %v919, %v924
          %v926 = vadd.f32 %v920, %v925
          %v927 = vadd.f32 %v921, %v925
          %v928 = vpack.c.bf16 %v927, %v926
          %v930 = vunpack.c.l.b16 %v928
          %v931 = vunpack.c.h.b16 %v928
          %v932 = vpack.c.b16 %v930, %v930
          %v933 = vpack.c.b16 %v931, %v931
          %936 = vst [vmem:[%s314] sm:$0xf] %v932
          %937 = vst [vmem:[%s314 + $0x4] sm:$0xf] %v933
        $region60: #{linear_ien_forward.1} parent=35 // pred_fallthru
          _
        %s938 = sand.u32 %s155, 1
        %s939 = scalar_lea.sflag [#allocation5], %s938
        %s940 = sand.u32 %s155, 1
        %s941 = smul.addr %s940, 8
        %s942 = scalar_lea.vmem [#allocation11], %s941
        // Predicated region
        $region61: #{linear_ien_forward.1} parent=35 // pred_check
          %p943 = pneg %p165
        $region62: #{linear_ien_forward.1} parent=35 // pred_check_branch
          %945 = sbr.rel (%p943) target = $region64
        $region63: #{linear_ien_forward.1} parent=35 // pred_region
          %s946 = smul.u32 2, %s28
          %s948 = ssub.s32 128, 128
          %949 = vsyncadd %s939, %s948
          %s950 = smul.addr %s946, 3
          %s951 = sadd.s32 %s29, %s950
          %s952 = smul.addr %s951, 64
          %s953 = scalar_lea.hbm %s4, %s952
          %s954 = sshll.u32 %s942, 4
          %s955 = int_to_ptr.vmem [resolvable:$true] %s954
          %960 = dma.vmem_to_hbm [thread:$0]  %s955, 128, %s953, %s939, 64, 192, 4
        $region64: #{linear_ien_forward.1} parent=35 // pred_fallthru
          _
      $region36: #{linear_ien_forward.1} parent=5 // pred_fallthru
        _
      %p961 = scmp.le.s32.totalorder 2, %s18
      // Predicated region
      $region65: #{linear_ien_forward.1} parent=5 // pred_check
        %p962 = pneg %p961
      $region66: #{linear_ien_forward.1} parent=5 // pred_check_branch
        %964 = sbr.rel (%p962) target = $region68
      $region67: #{linear_ien_forward.1} parent=5 // pred_region
        %s965 = ssub.s32 %s18, 2
        // Predicated region
        $region69: #{linear_ien_forward.1} parent=67 // pred_check
          %p966 = pneg %p171
        $region70: #{linear_ien_forward.1} parent=67 // pred_check_branch
          %968 = sbr.rel (%p966) target = $region72
        $region71: #{linear_ien_forward.1} parent=67 // pred_region
          %s969 = sand.u32 %s156, 1
          %s970 = scalar_lea.sflag [#allocation5], %s969
          %s971 = sand.u32 %s156, 1
          %s972 = smul.addr %s971, 8
          %s973 = scalar_lea.vmem [#allocation11], %s972
          %974 = dma.done %s970, 128
        $region72: #{linear_ien_forward.1} parent=67 // pred_fallthru
          _
      $region68: #{linear_ien_forward.1} parent=5 // pred_fallthru
        _
    $region6: #{linear_ien_forward.1} parent=1 // loop_footer
      %s22 = sadd.s32 1, %s18
    $region7: #{linear_ien_forward.1} parent=1 // loop_footer_branch
      %17 = sbr.rel target = $region3
    $region8: #{linear_ien_forward.1} parent=1 // loop_exit
      _
    %975 = vsyncpa [#allocation4], 1
    %s976 = scalar_lea.sflag [#allocation4], 1
    %977 = vsyncpa %s976, 1
    %978 = vsyncpa [#allocation9], 1
    %s979 = scalar_lea.sflag [#allocation9], 1
    %980 = vsyncpa %s979, 1
    %981 = vsyncpa [#allocation5], 1
    %s982 = scalar_lea.sflag [#allocation5], 1
    %983 = vsyncpa %s982, 1
    %984 = vsyncpa [#allocation6], 1
    %s985 = scalar_lea.sflag [#allocation6], 1
    %986 = vsyncpa %s985, 1

</llo_original>
